<compile_context>
chip_gen: v5e
topology: v5e:2x2
jax: 0.10.0
libtpu: 0.0.40
codegen_flags: <defaults>
</compile_context>

<pallas_src>
import math

import numpy as np

import jax
import jax.numpy as jnp
from jax.experimental import pallas as pl
from jax.experimental.pallas import tpu as pltpu


def _round_up(x: int, mult: int) -> int:
    return ((x + mult - 1) // mult) * mult


def _rfft_kernel(x_ref, basis_ref, out_ref):
    # x_ref:     (tm, N)     real input tile
    # basis_ref: (N, tn)     slice of the fused [cos | -sin | 0-pad] DFT basis
    # out_ref:   (tm, tn)    corresponding slice of [Re | Im] (lane-dense)
    out_ref[...] = jnp.dot(
        x_ref[...], basis_ref[...], preferred_element_type=jnp.float32
    )


def _dft_basis(n: int, width: int) -> jnp.ndarray:
    """Fused (N, width) f32 DFT basis: cols [0:K)=cos, [K:2K)=-sin, rest zero."""
    k = n // 2 + 1
    nn = np.arange(n, dtype=np.int64)[:, None]     # (N, 1)
    kk = np.arange(k, dtype=np.int64)[None, :]     # (1, K)
    # Exact integer (n*k) mod N keeps the angle in [0, 2*pi) for any N.
    ang = (2.0 * math.pi / n) * ((nn * kk) % n).astype(np.float64)
    basis = np.zeros((n, width), dtype=np.float32)
    basis[:, :k] = np.cos(ang)
    basis[:, k:2 * k] = -np.sin(ang)               # rfft sign convention
    return jnp.asarray(basis)


def _vmem_limits() -> tuple[int, int]:
    """(vmem_limit_bytes, tile_budget_bytes), generation-aware."""
    phys = 64 * 1024 * 1024                        # conservative default (v7x)
    try:
        info = pltpu.get_tpu_info()
        phys = int(getattr(info, "vmem_capacity_bytes", phys))
    except Exception:
        pass
    # Leave headroom for the compiler's own scratch / pipelining buffers.
    limit = max(32 * 1024 * 1024, phys - 16 * 1024 * 1024)
    budget = (limit * 3) // 4
    return limit, budget


def _choose_tiles(m: int, n: int, width: int, budget: int) -> tuple[int, int]:
    """Pick (tm, tn): M tile and frequency tile sizes that fit the VMEM budget."""
    # Frequency tile: keep the whole basis resident if it fits, else tile it.
    if n * width * 4 <= budget // 3:
        tn = width
    else:
        tn = (budget // (3 * 4 * n)) // 128 * 128
        tn = max(128, min(tn, 2048, width))

    basis_bytes = n * tn * 4                       # single-buffered basis block
    per_row = 2 * 4 * (n + tn)                     # double-buffered x + out rows
    avail = max(budget - basis_bytes, 8 * per_row)
    tm = min(avail // per_row, 512)                # fat tile fills the MXU M dim

    if m < 8:
        return m, int(tn)                          # full (tiny) leading dim
    tm = min(tm, (m // 8) * 8)                     # never exceed the array rows
    if m >= 512:
        # Keep >= 2 M blocks so the "parallel" M axis can shard across v7x's
        # two TensorCores.
        tm = min(tm, _round_up(-(-m // 2), 8))
    if tm >= 256 and m >= 256:
        tm = (tm // 256) * 256                     # clean native MXU M tiles
    else:
        tm = max(8, (tm // 8) * 8)
    return int(tm), int(tn)


def fourier_decomp(x: jnp.ndarray) -> jnp.ndarray:
    """rfft(x, axis=-1) implemented with a Pallas TPU kernel. Returns complex64."""
    orig_shape = x.shape
    n = orig_shape[-1]
    k = n // 2 + 1
    width = _round_up(2 * k, 128)                  # fused [Re | Im] lane-dense width
    m = math.prod(orig_shape[:-1])                 # static Python int

    x2d = x.reshape(m, n).astype(jnp.float32)
    basis = _dft_basis(n, width)                   # (N, width) f32

    vmem_limit, budget = _vmem_limits()
    tm, tn = _choose_tiles(m, n, width, budget)
    grid = (pl.cdiv(width, tn), pl.cdiv(m, tm))    # (freq tiles, M tiles)

    cost = pl.CostEstimate(
        flops=2 * m * n * width,
        transcendentals=0,
        bytes_accessed=4 * (grid[0] * m * n + n * width + m * width),
    )

    def _call(basis_spec):
        return pl.pallas_call(
            _rfft_kernel,
            out_shape=jax.ShapeDtypeStruct((m, width), jnp.float32),
            grid_spec=pltpu.PrefetchScalarGridSpec(
                num_scalar_prefetch=0,
                grid=grid,
                in_specs=[
                    pl.BlockSpec((tm, n), lambda f, i: (i, 0)),   # x tile
                    basis_spec,                                    # basis tile
                ],
                out_specs=pl.BlockSpec((tm, tn), lambda f, i: (i, f)),
            ),
            compiler_params=pltpu.CompilerParams(
                dimension_semantics=("parallel", "parallel"),
                vmem_limit_bytes=vmem_limit,
            ),
            cost_estimate=cost,
        )(x2d, basis)

    try:
        # Basis block index depends only on the outer freq axis -> it never
        # needs double-buffering; single-buffer it to free VMEM for bigger tm.
        out = _call(
            pl.BlockSpec((n, tn), lambda f, i: (0, f),
                         pipeline_mode=pl.Buffered(1))
        )
    except Exception:
        # Older JAX without pipeline_mode support: plain (double-buffered) spec.
        out = _call(pl.BlockSpec((n, tn), lambda f, i: (0, f)))

    # Split fused [Re | Im] (contiguous 2K columns) and drop the lane padding.
    re = out[:, :k]
    im = out[:, k:2 * k]
    x_ft = jax.lax.complex(re, im).reshape(*orig_shape[:-1], k)
    # TODO(synk): the PyTorch forward has no `return` (yields None); we return
    # x_ft, the value actually computed, as the meaningful output.
    return x_ft


if __name__ == "__main__":
    key = jax.random.PRNGKey(0)
    B, L, N = 2, 8, 32  # batch, seq, hidden — rfft along the last (hidden) axis
    x = jax.random.normal(key, (B, L, N), dtype=jnp.float32)

    x_ft = fourier_decomp(x)
    jax.block_until_ready(x_ft)

    # Sanity check against JAX's rfft (same semantics as torch.fft.rfft, dim=-1).
    ref = jnp.fft.rfft(x, axis=-1)
    assert x_ft.shape == ref.shape, (x_ft.shape, ref.shape)
    err = float(jnp.max(jnp.abs(x_ft - ref)))
    assert err < 1e-3, f"max abs error too large: {err}"

    print("KERNEL_OK")
</pallas_src>

<mosaic_0001>
module attributes {stable_mosaic.version = 11 : i64} {
  func.func @_rfft_kernel(%arg0: i32, %arg1: i32, %arg2: memref<16x32xf32, #tpu.memory_space<vmem>>, %arg3: memref<32x128xf32, #tpu.memory_space<vmem>>, %arg4: memref<16x128xf32, #tpu.memory_space<vmem>>) attributes {dimension_semantics = [#tpu.dimension_semantics<parallel>, #tpu.dimension_semantics<parallel>], iteration_bounds = array<i64: 1, 1>, scalar_prefetch = 0 : i64, scratch_operands = 0 : i64, tpu.core_type = #tpu.core_type<tc>, window_params = [{transform_indices = @transform_0, window_bounds = array<i64: 16, 32>}, {pipeline_mode = #tpu.pipeline_mode<synchronous>, transform_indices = @transform_1, window_bounds = array<i64: 32, 128>}, {transform_indices = @transform_2, window_bounds = array<i64: 16, 128>}]} {
    %c0 = arith.constant 0 : index
    %c0_0 = arith.constant 0 : index
    %0 = vector.load %arg2[%c0, %c0_0] : memref<16x32xf32, #tpu.memory_space<vmem>>, vector<16x32xf32>
    %c0_1 = arith.constant 0 : index
    %c0_2 = arith.constant 0 : index
    %1 = vector.load %arg3[%c0_1, %c0_2] : memref<32x128xf32, #tpu.memory_space<vmem>>, vector<32x128xf32>
    %cst = arith.constant dense<0.000000e+00> : vector<16x128xf32>
    %2 = tpu.matmul %0, %1, %cst {dimension_numbers = #tpu.dot_dimension_numbers<[1], [0], [0], [1], [0, 0, 1, 1], [], []>} : vector<16x32xf32>, vector<32x128xf32>, vector<16x128xf32> -> vector<16x128xf32>
    %c0_3 = arith.constant 0 : index
    %c0_4 = arith.constant 0 : index
    %3 = vector.load %arg4[%c0_3, %c0_4] : memref<16x128xf32, #tpu.memory_space<vmem>>, vector<16x128xf32>
    tpu.vector_store %arg4[%c0_3, %c0_4], %2 {strides = array<i32>} : memref<16x128xf32, #tpu.memory_space<vmem>>, vector<16x128xf32>,
    return
  }
  func.func @transform_0(%arg0: i32, %arg1: i32) -> (i32, i32) {
    %c0_i32 = arith.constant 0 : i32
    %c0_i32_0 = arith.constant 0 : i32
    return %arg1, %c0_i32 : i32, i32
  }
  func.func @transform_1(%arg0: i32, %arg1: i32) -> (i32, i32) {
    %c0_i32 = arith.constant 0 : i32
    %c0_i32_0 = arith.constant 0 : i32
    return %c0_i32, %arg0 : i32, i32
  }
  func.func @transform_2(%arg0: i32, %arg1: i32) -> (i32, i32) {
    %c0_i32 = arith.constant 0 : i32
    return %arg1, %arg0 : i32, i32
  }
}

module attributes {stable_mosaic.version = 11 : i64} {
  func.func @_rfft_kernel(%arg0: i32, %arg1: i32, %arg2: memref<16x32xf32, #tpu.memory_space<vmem>>, %arg3: memref<32x128xf32, #tpu.memory_space<vmem>>, %arg4: memref<16x128xf32, #tpu.memory_space<vmem>>) attributes {dimension_semantics = [#tpu.dimension_semantics<parallel>, #tpu.dimension_semantics<parallel>], iteration_bounds = array<i64: 1, 1>, scalar_prefetch = 0 : i64, scratch_operands = 0 : i64, tpu.core_type = #tpu.core_type<tc>, window_params = [{transform_indices = @transform_0, window_bounds = array<i64: 16, 32>}, {transform_indices = @transform_1, window_bounds = array<i64: 32, 128>}, {transform_indices = @transform_2, window_bounds = array<i64: 16, 128>}]} {
    %c0 = arith.constant 0 : index
    %c0_0 = arith.constant 0 : index
    %0 = vector.load %arg2[%c0, %c0_0] : memref<16x32xf32, #tpu.memory_space<vmem>>, vector<16x32xf32>
    %c0_1 = arith.constant 0 : index
    %c0_2 = arith.constant 0 : index
    %1 = vector.load %arg3[%c0_1, %c0_2] : memref<32x128xf32, #tpu.memory_space<vmem>>, vector<32x128xf32>
    %cst = arith.constant dense<0.000000e+00> : vector<16x128xf32>
    %2 = tpu.matmul %0, %1, %cst {dimension_numbers = #tpu.dot_dimension_numbers<[1], [0], [0], [1], [0, 0, 1, 1], [], []>} : vector<16x32xf32>, vector<32x128xf32>, vector<16x128xf32> -> vector<16x128xf32>
    %c0_3 = arith.constant 0 : index
    %c0_4 = arith.constant 0 : index
    %3 = vector.load %arg4[%c0_3, %c0_4] : memref<16x128xf32, #tpu.memory_space<vmem>>, vector<16x128xf32>
    tpu.vector_store %arg4[%c0_3, %c0_4], %2 {strides = array<i32>} : memref<16x128xf32, #tpu.memory_space<vmem>>, vector<16x128xf32>,
    return
  }
  func.func @transform_0(%arg0: i32, %arg1: i32) -> (i32, i32) {
    %c0_i32 = arith.constant 0 : i32
    %c0_i32_0 = arith.constant 0 : i32
    return %arg1, %c0_i32 : i32, i32
  }
  func.func @transform_1(%arg0: i32, %arg1: i32) -> (i32, i32) {
    %c0_i32 = arith.constant 0 : i32
    %c0_i32_0 = arith.constant 0 : i32
    return %c0_i32, %arg0 : i32, i32
  }
  func.func @transform_2(%arg0: i32, %arg1: i32) -> (i32, i32) {
    %c0_i32 = arith.constant 0 : i32
    return %arg1, %arg0 : i32, i32
  }
}

</mosaic_0001>

<llo_original>
// kernel: tpu_custom_call.1
$region0: #{tpu_custom_call.1}
  #allocation0 [shape = 'u32[]', space=smem, size = 0x4, offset = 0x4, fixed_abs, tag = 'smem constant byte address 0x4 - core index']
  #allocation1 [shape = 'u32[72,128]{1,0:T(1,128)}', space=vmem, size = 0x9000, scoped, tag = 'internal scratch']
  %s0 = inlined_call_operand.hbm [shape: f32[16,32], index: 0, kind: input, shape index: {}]
  %s1 = inlined_call_operand.hbm [shape: f32[32,128], index: 1, kind: input, shape index: {}]
  %s2 = inlined_call_operand.hbm [shape: f32[16,128], index: 2, kind: output, shape index: {}]
  %s3 = sld [smem:[#allocation0]]
  $region26: #{tpu_custom_call.1} parent=0
    _
  %s5 = ssub.s32 1, %s3
  %s6 = scalar_select 0, %s5, %s3
  $region1: #{tpu_custom_call.1} parent=0
    #allocation2 [shape = 'u8[8192]{0}', space=vmem, size = 0x2000, scoped, tag = 'input window, operand 0, single buffered']
    #allocation3 [shape = 's32[1]{0}', space=sflag, size = 0x4, scoped, tag = 'scoped memory for tpu_custom_call.1']
    #allocation4 [shape = 's32[1]{0}', space=sflag, size = 0x4, scoped, tag = 'scoped memory for tpu_custom_call.1']
    #allocation5 [shape = 'u8[16384]{0}', space=vmem, size = 0x4000, scoped, tag = 'input window, operand 1, single buffered']
    #allocation6 [shape = 's32[1]{0}', space=sflag, size = 0x4, scoped, tag = 'scoped memory for tpu_custom_call.1']
    #allocation7 [shape = 'u8[8192]{0}', space=vmem, size = 0x2000, scoped, tag = 'output window, operand 0, single buffered']
    %7 = vsyncpa [#allocation3], 0
    %8 = vsyncpa [#allocation6], 0
    %9 = vsyncpa [#allocation4], 0
    // Predicated region
    $region2: #{tpu_custom_call.1} parent=1 // pred_check
      _
    $region3: #{tpu_custom_call.1} parent=1 // pred_check_branch
      %11 = sbr.rel (0) target = $region5
    $region4: #{tpu_custom_call.1} parent=1 // pred_region
      %13 = vsyncadd [#allocation3], 0
      %s14 = sshll.u32 %s0, 4
      %s15 = int_to_ptr.hbm [resolvable:$true] %s14
      %s16 = sshll.u32 [#allocation2], 4
      %s17 = int_to_ptr.vmem [resolvable:$true] %s16
      %22 = dma.hbm_to_vmem [thread:$0]  %s15, 256, %s17, [#allocation3], 128, 128, 8
    $region5: #{tpu_custom_call.1} parent=1 // pred_fallthru
      _
    // Predicated region
    $region6: #{tpu_custom_call.1} parent=1 // pred_check
      _
    $region7: #{tpu_custom_call.1} parent=1 // pred_check_branch
      %24 = sbr.rel (0) target = $region9
    $region8: #{tpu_custom_call.1} parent=1 // pred_region
      %26 = vsyncadd [#allocation6], 0
      %s27 = sshll.u32 %s1, 4
      %s28 = int_to_ptr.hbm [resolvable:$true] %s27
      %s29 = sshll.u32 [#allocation5], 4
      %s30 = int_to_ptr.vmem [resolvable:$true] %s29
      %35 = dma.hbm_to_vmem [thread:$0]  %s28, 512, %s30, [#allocation6], 128, 128, 8
    $region9: #{tpu_custom_call.1} parent=1 // pred_fallthru
      _
    // Predicated region
    $region10: #{tpu_custom_call.1} parent=1 // pred_check
      _
    $region11: #{tpu_custom_call.1} parent=1 // pred_check_branch
      %37 = sbr.rel (0) target = $region13
    $region12: #{tpu_custom_call.1} parent=1 // pred_region
      %39 = dma.done [#allocation3], 256
    $region13: #{tpu_custom_call.1} parent=1 // pred_fallthru
      _
    // Predicated region
    $region14: #{tpu_custom_call.1} parent=1 // pred_check
      _
    $region15: #{tpu_custom_call.1} parent=1 // pred_check_branch
      %41 = sbr.rel (0) target = $region17
    $region16: #{tpu_custom_call.1} parent=1 // pred_region
      %43 = dma.done [#allocation6], 512
    $region17: #{tpu_custom_call.1} parent=1 // pred_fallthru
      _
    %v44 = vld [vmem:[#allocation2] sm:$0xff]
    %v45 = vld [vmem:[#allocation2 + $0x8] sm:$0xff]
    %v46 = vld [vmem:[#allocation5] sm:$0xff]
    %v47 = vld [vmem:[#allocation5 + $0x8] sm:$0xff]
    %v48 = vld [vmem:[#allocation5 + $0x10] sm:$0xff]
    %v49 = vld [vmem:[#allocation5 + $0x18] sm:$0xff]
    %vm50 = vcmask 261120
    %v52 = vsel %vm50, %v44, 0
    %v55 = vsel %vm50, %v45, 0
    %57 = vmatpush.msra.mxu0 0.0
    %58 = vmatpush.msra.mxu0 0.0
    %59 = vmatpush.msra.mxu0 0.0
    %60 = vmatpush.msra.mxu0 0.0
    %61 = vmatpush.msra.mxu0 0.0
    %62 = vmatpush.msra.mxu0 0.0
    %63 = vmatpush.msra.mxu0 0.0
    %64 = vmatpush.msra.mxu0 0.0
    %65 = vmatpush.msra.mxu0 0.0
    %66 = vmatpush.msra.mxu0 0.0
    %67 = vmatpush.msra.mxu0 0.0
    %68 = vmatpush.msra.mxu0 0.0
    %69 = vmatpush.msra.mxu0 %v49
    %70 = vmatpush.msra.mxu0 %v48
    %71 = vmatpush.msra.mxu0 %v47
    %72 = vmatpush.msra.mxu0 %v46
    %73 = vmatmul.f32.gmra.mxu0 %v52
    %v74 = vpop.f32.mrf.mxu0
    %v75 = vadd.f32 0.0, %v74
    %76 = vmatmul.f32.gmra.mxu0 %v55
    %v77 = vpop.f32.mrf.mxu0
    %v78 = vadd.f32 0.0, %v77
    %79 = vdwg.mxu0
    %80 = vst [vmem:[#allocation7] sm:$0xff] %v75
    %81 = vst [vmem:[#allocation7 + $0x8] sm:$0xff] %v78
    // Predicated region
    $region18: #{tpu_custom_call.1} parent=1 // pred_check
      _
    $region19: #{tpu_custom_call.1} parent=1 // pred_check_branch
      %83 = sbr.rel (0) target = $region21
    $region20: #{tpu_custom_call.1} parent=1 // pred_region
      %85 = vsyncadd [#allocation4], 0
      %s86 = sshll.u32 [#allocation7], 4
      %s87 = int_to_ptr.vmem [resolvable:$true] %s86
      %s88 = sshll.u32 %s2, 4
      %s89 = int_to_ptr.hbm [resolvable:$true] %s88
      %94 = dma.vmem_to_hbm [thread:$0]  %s87, 256, %s89, [#allocation4], 128, 128, 8
    $region21: #{tpu_custom_call.1} parent=1 // pred_fallthru
      _
    // Predicated region
    $region22: #{tpu_custom_call.1} parent=1 // pred_check
      _
    $region23: #{tpu_custom_call.1} parent=1 // pred_check_branch
      %96 = sbr.rel (0) target = $region25
    $region24: #{tpu_custom_call.1} parent=1 // pred_region
      %98 = dma.done [#allocation4], 256
    $region25: #{tpu_custom_call.1} parent=1 // pred_fallthru
      _
    %99 = vsyncpa [#allocation3], 1
    %100 = vsyncpa [#allocation6], 1
    %101 = vsyncpa [#allocation4], 1

// kernel: tpu_custom_call.1
$region0: #{tpu_custom_call.1}
  #allocation0 [shape = 'u32[]', space=smem, size = 0x4, offset = 0x4, fixed_abs, tag = 'smem constant byte address 0x4 - core index']
  #allocation1 [shape = 'u32[72,128]{1,0:T(1,128)}', space=vmem, size = 0x9000, scoped, tag = 'internal scratch']
  %s0 = inlined_call_operand.hbm [shape: f32[16,32], index: 0, kind: input, shape index: {}]
  %s1 = inlined_call_operand.hbm [shape: f32[32,128], index: 1, kind: input, shape index: {}]
  %s2 = inlined_call_operand.hbm [shape: f32[16,128], index: 2, kind: output, shape index: {}]
  %s3 = sld [smem:[#allocation0]]
  $region26: #{tpu_custom_call.1} parent=0
    _
  %s5 = ssub.s32 1, %s3
  %s6 = scalar_select 0, %s5, %s3
  $region1: #{tpu_custom_call.1} parent=0
    #allocation2 [shape = 'u8[8192]{0}', space=vmem, size = 0x2000, scoped, tag = 'input window, operand 0, single buffered']
    #allocation3 [shape = 's32[1]{0}', space=sflag, size = 0x4, scoped, tag = 'scoped memory for tpu_custom_call.1']
    #allocation4 [shape = 's32[1]{0}', space=sflag, size = 0x4, scoped, tag = 'scoped memory for tpu_custom_call.1']
    #allocation5 [shape = 'u8[16384]{0}', space=vmem, size = 0x4000, scoped, tag = 'input window, operand 1, single buffered']
    #allocation6 [shape = 's32[1]{0}', space=sflag, size = 0x4, scoped, tag = 'scoped memory for tpu_custom_call.1']
    #allocation7 [shape = 'u8[8192]{0}', space=vmem, size = 0x2000, scoped, tag = 'output window, operand 0, single buffered']
    %7 = vsyncpa [#allocation3], 0
    %8 = vsyncpa [#allocation6], 0
    %9 = vsyncpa [#allocation4], 0
    // Predicated region
    $region2: #{tpu_custom_call.1} parent=1 // pred_check
      _
    $region3: #{tpu_custom_call.1} parent=1 // pred_check_branch
      %11 = sbr.rel (0) target = $region5
    $region4: #{tpu_custom_call.1} parent=1 // pred_region
      %13 = vsyncadd [#allocation3], 0
      %s14 = sshll.u32 %s0, 4
      %s15 = int_to_ptr.hbm [resolvable:$true] %s14
      %s16 = sshll.u32 [#allocation2], 4
      %s17 = int_to_ptr.vmem [resolvable:$true] %s16
      %22 = dma.hbm_to_vmem [thread:$0]  %s15, 256, %s17, [#allocation3], 128, 128, 8
    $region5: #{tpu_custom_call.1} parent=1 // pred_fallthru
      _
    // Predicated region
    $region6: #{tpu_custom_call.1} parent=1 // pred_check
      _
    $region7: #{tpu_custom_call.1} parent=1 // pred_check_branch
      %24 = sbr.rel (0) target = $region9
    $region8: #{tpu_custom_call.1} parent=1 // pred_region
      %26 = vsyncadd [#allocation6], 0
      %s27 = sshll.u32 %s1, 4
      %s28 = int_to_ptr.hbm [resolvable:$true] %s27
      %s29 = sshll.u32 [#allocation5], 4
      %s30 = int_to_ptr.vmem [resolvable:$true] %s29
      %35 = dma.hbm_to_vmem [thread:$0]  %s28, 512, %s30, [#allocation6], 128, 128, 8
    $region9: #{tpu_custom_call.1} parent=1 // pred_fallthru
      _
    // Predicated region
    $region10: #{tpu_custom_call.1} parent=1 // pred_check
      _
    $region11: #{tpu_custom_call.1} parent=1 // pred_check_branch
      %37 = sbr.rel (0) target = $region13
    $region12: #{tpu_custom_call.1} parent=1 // pred_region
      %39 = dma.done [#allocation3], 256
    $region13: #{tpu_custom_call.1} parent=1 // pred_fallthru
      _
    // Predicated region
    $region14: #{tpu_custom_call.1} parent=1 // pred_check
      _
    $region15: #{tpu_custom_call.1} parent=1 // pred_check_branch
      %41 = sbr.rel (0) target = $region17
    $region16: #{tpu_custom_call.1} parent=1 // pred_region
      %43 = dma.done [#allocation6], 512
    $region17: #{tpu_custom_call.1} parent=1 // pred_fallthru
      _
    %v44 = vld [vmem:[#allocation2] sm:$0xff]
    %v45 = vld [vmem:[#allocation2 + $0x8] sm:$0xff]
    %v46 = vld [vmem:[#allocation5] sm:$0xff]
    %v47 = vld [vmem:[#allocation5 + $0x8] sm:$0xff]
    %v48 = vld [vmem:[#allocation5 + $0x10] sm:$0xff]
    %v49 = vld [vmem:[#allocation5 + $0x18] sm:$0xff]
    %vm50 = vcmask 261120
    %v52 = vsel %vm50, %v44, 0
    %v55 = vsel %vm50, %v45, 0
    %57 = vmatpush.msra.mxu0 0.0
    %58 = vmatpush.msra.mxu0 0.0
    %59 = vmatpush.msra.mxu0 0.0
    %60 = vmatpush.msra.mxu0 0.0
    %61 = vmatpush.msra.mxu0 0.0
    %62 = vmatpush.msra.mxu0 0.0
    %63 = vmatpush.msra.mxu0 0.0
    %64 = vmatpush.msra.mxu0 0.0
    %65 = vmatpush.msra.mxu0 0.0
    %66 = vmatpush.msra.mxu0 0.0
    %67 = vmatpush.msra.mxu0 0.0
    %68 = vmatpush.msra.mxu0 0.0
    %69 = vmatpush.msra.mxu0 %v49
    %70 = vmatpush.msra.mxu0 %v48
    %71 = vmatpush.msra.mxu0 %v47
    %72 = vmatpush.msra.mxu0 %v46
    %73 = vmatmul.f32.gmra.mxu0 %v52
    %v74 = vpop.f32.mrf.mxu0
    %v75 = vadd.f32 0.0, %v74
    %76 = vmatmul.f32.gmra.mxu0 %v55
    %v77 = vpop.f32.mrf.mxu0
    %v78 = vadd.f32 0.0, %v77
    %79 = vdwg.mxu0
    %80 = vst [vmem:[#allocation7] sm:$0xff] %v75
    %81 = vst [vmem:[#allocation7 + $0x8] sm:$0xff] %v78
    // Predicated region
    $region18: #{tpu_custom_call.1} parent=1 // pred_check
      _
    $region19: #{tpu_custom_call.1} parent=1 // pred_check_branch
      %83 = sbr.rel (0) target = $region21
    $region20: #{tpu_custom_call.1} parent=1 // pred_region
      %85 = vsyncadd [#allocation4], 0
      %s86 = sshll.u32 [#allocation7], 4
      %s87 = int_to_ptr.vmem [resolvable:$true] %s86
      %s88 = sshll.u32 %s2, 4
      %s89 = int_to_ptr.hbm [resolvable:$true] %s88
      %94 = dma.vmem_to_hbm [thread:$0]  %s87, 256, %s89, [#allocation4], 128, 128, 8
    $region21: #{tpu_custom_call.1} parent=1 // pred_fallthru
      _
    // Predicated region
    $region22: #{tpu_custom_call.1} parent=1 // pred_check
      _
    $region23: #{tpu_custom_call.1} parent=1 // pred_check_branch
      %96 = sbr.rel (0) target = $region25
    $region24: #{tpu_custom_call.1} parent=1 // pred_region
      %98 = dma.done [#allocation4], 256
    $region25: #{tpu_custom_call.1} parent=1 // pred_fallthru
      _
    %99 = vsyncpa [#allocation3], 1
    %100 = vsyncpa [#allocation6], 1
    %101 = vsyncpa [#allocation4], 1

</llo_original>
